<compile_context>
chip_gen: v5e
topology: v5e:2x2
jax: 0.10.0
libtpu: 0.0.40
codegen_flags: <defaults>
</compile_context>

<pallas_src>
import functools
import math

import jax
import jax.numpy as jnp
from jax.experimental import pallas as pl
from jax.experimental.pallas import tpu as pltpu


def _round_up(a, m):
    return ((a + m - 1) // m) * m


# ---------------------------------------------------------------------------
# Kernels
# ---------------------------------------------------------------------------
def _ln_rows_kernel(gamma_ref, beta_ref, x_ref, o_ref, *,
                    inv_nm1, std_is_one, eps):
    """Row-blocked path: x block is (row_tile, H), one LayerNorm row per row.

    NOTE: the trailing partial block contains unspecified padded rows. Every
    row's result depends only on that row and padded rows are masked on store,
    so the garbage never escapes — do not add cross-row reductions here.
    """
    x = x_ref[...].astype(jnp.float32)
    mean = jnp.mean(x, axis=-1, keepdims=True)
    xc = x - mean
    g = gamma_ref[0]
    b = beta_ref[0]
    if std_is_one:
        # torch branch for H == 1: std = 1 -> constant denominator.
        o_ref[...] = (xc * (g / (1.0 + eps)) + b).astype(o_ref.dtype)
    else:
        var = jnp.sum(xc * xc, axis=-1, keepdims=True) * inv_nm1   # unbiased N-1
        # Per-row reciprocal folded into gamma (mul-by-reciprocal, last-ulp vs
        # torch's true divide — within the 1e-5 tolerance).
        scale = g * pl.reciprocal(jnp.sqrt(var) + eps, approx=False)
        o_ref[...] = (xc * scale + b).astype(o_ref.dtype)


def _ln_packed_kernel(gamma_ref, beta_ref, seg_ref, x_ref, o_ref, *,
                      inv_h, inv_nm1, std_is_one, eps):
    """Lane-dense path for small H (H | 128): k = 128 // H original rows per
    128-wide lane row. Segmented (per original row) sums via a block-diagonal
    0/1 matmul on the MXU; all loads/stores are unmasked 128-lane accesses.
    Padded rows in the trailing partial block stay within their own lane rows
    (the segment matrix never mixes rows) and are masked on store."""
    x = x_ref[...].astype(jnp.float32)            # (row_tile, 128)
    seg = seg_ref[...]                            # (128, 128) bf16, exact 0/1
    g = gamma_ref[0]
    b = beta_ref[0]

    def seg_sum(a):
        # f32-exact a @ seg via 3 bf16 MXU passes (seg is exact in bf16, so
        # splitting only the lhs recovers ~24 mantissa bits).
        p1 = a.astype(jnp.bfloat16)
        r1 = a - p1.astype(jnp.float32)
        p2 = r1.astype(jnp.bfloat16)
        p3 = (r1 - p2.astype(jnp.float32)).astype(jnp.bfloat16)
        s = jnp.dot(p1, seg, preferred_element_type=jnp.float32)
        s = s + jnp.dot(p2, seg, preferred_element_type=jnp.float32)
        return s + jnp.dot(p3, seg, preferred_element_type=jnp.float32)

    mean = seg_sum(x) * inv_h                     # broadcast within each segment
    xc = x - mean
    if std_is_one:
        o_ref[...] = (xc * (g / (1.0 + eps)) + b).astype(o_ref.dtype)
    else:
        std = jnp.sqrt(seg_sum(xc * xc) * inv_nm1)            # unbiased N-1
        scale = g * pl.reciprocal(std + eps, approx=False)
        o_ref[...] = (xc * scale + b).astype(o_ref.dtype)


# ---------------------------------------------------------------------------
# Wrapper
# ---------------------------------------------------------------------------
def layer_norm_pallas(x, gamma, beta, eps=1e-6, block_byte_budget=8 << 20):
    """x: (..., H). gamma, beta: shape-(1,) scalar params (PyTorch semantics)."""
    orig_shape = x.shape
    H = orig_shape[-1]
    R = max(1, math.prod(orig_shape[:-1]))
    x2 = x.reshape(R, H)
    itemsize = jnp.dtype(x.dtype).itemsize

    # --- generation-aware VMEM cap ------------------------------------------
    try:
        vmem_cap = int(pltpu.get_tpu_info().vmem_capacity_bytes)
    except Exception:
        vmem_cap = 64 << 20                       # conservative (v7x-sized)
    if vmem_cap < (16 << 20):
        vmem_cap = 64 << 20

    std_is_one = (H == 1)                         # static, matches torch branch
    inv_nm1 = 1.0 / float(max(H - 1, 1))          # torch.std default: N-1

    # --- lane-dense packing for small H --------------------------------------
    packed = (H < 128) and (128 % H == 0) and (R % (128 // H) == 0)
    # TODO(synk): when R % (128 // H) != 0 we fall back to the lane-sparse
    # path (padding R would need an extra HBM copy of the whole array).
    if packed:
        k = 128 // H
        rows, W = R // k, 128
    else:
        rows, W = R, H
    xk = x2.reshape(rows, W)

    # --- tile sizing ----------------------------------------------------------
    sub = max(8, 32 // itemsize)                  # sublane granularity per dtype
    w_pad = _round_up(W, 128)                     # VMEM lane padding
    row_bytes_io = W * itemsize                   # actual HBM bytes per row
    # VMEM per row: 2x double-buffered in + 2x out blocks (I/O dtype) plus
    # ~6 block-sized f32 temporaries inside the kernel.
    bytes_per_row_vmem = w_pad * (4 * itemsize + 6 * 4)
    vmem_rows = max(sub, ((int(0.85 * vmem_cap) - (2 << 20))
                          // max(bytes_per_row_vmem, 1)) // sub * sub)
    budget_rows = max(sub, (block_byte_budget // max(row_bytes_io, 1)) // sub * sub)
    max_rows = min(budget_rows, vmem_rows)
    # Keep >= ~8 grid steps when rows permit (two v7x TCs + pipeline overlap).
    tile_for_steps = _round_up(max(1, pl.cdiv(rows, 8)), sub)
    row_tile = min(max_rows, max(sub, tile_for_steps))
    grid = (pl.cdiv(rows, row_tile),)             # trailing partial block masked

    # vmem_limit derived from the actual buffer set, clamped under physical VMEM.
    vmem_limit = int(min(max(row_tile * bytes_per_row_vmem + (2 << 20), 16 << 20),
                         int(0.9 * vmem_cap)))
    # TODO(synk): pathologically wide H (one sub-row block > ~0.85*VMEM) would
    # need an H-tiled two-stage reduction path; not implemented.

    g1 = jnp.asarray(gamma, jnp.float32).reshape(1)
    b1 = jnp.asarray(beta, jnp.float32).reshape(1)

    common = dict(
        out_shape=jax.ShapeDtypeStruct((rows, W), x.dtype),
        grid=grid,
        out_specs=pl.BlockSpec((row_tile, W), lambda i: (i, 0)),
        compiler_params=pltpu.CompilerParams(
            dimension_semantics=("parallel",),
            vmem_limit_bytes=vmem_limit,
        ),
    )

    if packed:
        idx = jnp.arange(128, dtype=jnp.int32)
        seg_mat = (idx[:, None] // H == idx[None, :] // H).astype(jnp.bfloat16)
        kernel = functools.partial(
            _ln_packed_kernel, inv_h=1.0 / float(H), inv_nm1=inv_nm1,
            std_is_one=std_is_one, eps=float(eps))
        out2 = pl.pallas_call(
            kernel,
            in_specs=[
                pl.BlockSpec(memory_space=pltpu.MemorySpace.SMEM),  # gamma (1,)
                pl.BlockSpec(memory_space=pltpu.MemorySpace.SMEM),  # beta  (1,)
                pl.BlockSpec((128, 128), lambda i: (0, 0)),         # seg matrix
                pl.BlockSpec((row_tile, W), lambda i: (i, 0)),      # x block
            ],
            **common,
        )(g1, b1, seg_mat, xk)
    else:
        kernel = functools.partial(
            _ln_rows_kernel, inv_nm1=inv_nm1,
            std_is_one=std_is_one, eps=float(eps))
        out2 = pl.pallas_call(
            kernel,
            in_specs=[
                pl.BlockSpec(memory_space=pltpu.MemorySpace.SMEM),  # gamma (1,)
                pl.BlockSpec(memory_space=pltpu.MemorySpace.SMEM),  # beta  (1,)
                pl.BlockSpec((row_tile, W), lambda i: (i, 0)),      # x block
            ],
            **common,
        )(g1, b1, xk)

    return out2.reshape(orig_shape)


# ---------------------------------------------------------------------------
# Pure-JAX reference (matches the PyTorch forward exactly)
# ---------------------------------------------------------------------------
def layer_norm_ref(x, gamma, beta, eps=1e-6):
    xf = x.astype(jnp.float32)
    mean = jnp.mean(xf, axis=-1, keepdims=True)
    H = x.shape[-1]
    if H == 1:
        std = jnp.float32(1.0)
    else:
        var = jnp.sum((xf - mean) ** 2, axis=-1, keepdims=True) / (H - 1)
        std = jnp.sqrt(var)
    return (gamma[0] * (xf - mean) / (std + eps) + beta[0]).astype(x.dtype)


if __name__ == "__main__":
    key = jax.random.PRNGKey(0)

    # Small shapes consistent with the module: batch=2, seq=8, hidden=32.
    x = jax.random.normal(key, (2, 8, 32), dtype=jnp.float32)

    # Deterministic parameter init, as in __init__(gamma): gamma*ones(1), zeros(1)
    gamma = jnp.full((1,), 1.0, dtype=jnp.float32)
    beta = jnp.zeros((1,), dtype=jnp.float32)

    # Lane-dense packed path (H=32 divides 128, R=16 divisible by k=4).
    out = jax.block_until_ready(layer_norm_pallas(x, gamma, beta))
    ref = layer_norm_ref(x, gamma, beta)
    assert out.shape == x.shape and out.dtype == x.dtype
    assert jnp.allclose(out, ref, atol=1e-5, rtol=1e-5)

    # Fallback row path + masked trailing block: 3*5 = 15 rows (not % k).
    x2 = jax.random.normal(jax.random.PRNGKey(1), (3, 5, 32), dtype=jnp.float32)
    out2 = jax.block_until_ready(layer_norm_pallas(x2, gamma, beta))
    assert jnp.allclose(out2, layer_norm_ref(x2, gamma, beta),
                        atol=1e-5, rtol=1e-5)

    print("KERNEL_OK")
</pallas_src>

<mosaic_0001>
module attributes {stable_mosaic.version = 11 : i64} {
  func.func @_ln_packed_kernel(%arg0: i32, %arg1: memref<1xf32, #tpu.memory_space<smem>>, %arg2: memref<1xf32, #tpu.memory_space<smem>>, %arg3: memref<128x128xbf16, #tpu.memory_space<vmem>>, %arg4: memref<8x128xf32, #tpu.memory_space<vmem>>, %arg5: memref<8x128xf32, #tpu.memory_space<vmem>>) attributes {dimension_semantics = [#tpu.dimension_semantics<parallel>], iteration_bounds = array<i64: 1>, scalar_prefetch = 0 : i64, scratch_operands = 0 : i64, tpu.core_type = #tpu.core_type<tc>, window_params = [{transform_indices = @transform_0, window_bounds = array<i64: 1>}, {transform_indices = @transform_1, window_bounds = array<i64: 1>}, {pipeline_mode = #tpu.pipeline_mode<synchronous>, transform_indices = @transform_2, window_bounds = array<i64: 128, 128>}, {transform_indices = @transform_3, window_bounds = array<i64: 8, 128>}, {transform_indices = @transform_4, window_bounds = array<i64: 8, 128>}]} {
    %c0 = arith.constant 0 : index
    %c0_0 = arith.constant 0 : index
    %0 = vector.load %arg4[%c0, %c0_0] : memref<8x128xf32, #tpu.memory_space<vmem>>, vector<8x128xf32>
    %c0_1 = arith.constant 0 : index
    %c0_2 = arith.constant 0 : index
    %1 = vector.load %arg3[%c0_1, %c0_2] : memref<128x128xbf16, #tpu.memory_space<vmem>>, vector<128x128xbf16>
    %c0_3 = arith.constant 0 : index
    %2 = memref.load %arg1[%c0_3] : memref<1xf32, #tpu.memory_space<smem>>
    %c0_4 = arith.constant 0 : index
    %3 = memref.load %arg2[%c0_4] : memref<1xf32, #tpu.memory_space<smem>>
    %4 = arith.truncf %0 : vector<8x128xf32> to vector<8x128xbf16>
    %5 = arith.extf %4 : vector<8x128xbf16> to vector<8x128xf32>
    %6 = arith.subf %0, %5 : vector<8x128xf32>
    %7 = arith.truncf %6 : vector<8x128xf32> to vector<8x128xbf16>
    %8 = arith.extf %7 : vector<8x128xbf16> to vector<8x128xf32>
    %9 = arith.subf %6, %8 : vector<8x128xf32>
    %10 = arith.truncf %9 : vector<8x128xf32> to vector<8x128xbf16>
    %cst = arith.constant dense<0.000000e+00> : vector<8x128xf32>
    %11 = tpu.matmul %4, %1, %cst {dimension_numbers = #tpu.dot_dimension_numbers<[1], [0], [0], [1], [0, 0, 1, 1], [], []>} : vector<8x128xbf16>, vector<128x128xbf16>, vector<8x128xf32> -> vector<8x128xf32>
    %cst_5 = arith.constant dense<0.000000e+00> : vector<8x128xf32>
    %12 = tpu.matmul %7, %1, %cst_5 {dimension_numbers = #tpu.dot_dimension_numbers<[1], [0], [0], [1], [0, 0, 1, 1], [], []>} : vector<8x128xbf16>, vector<128x128xbf16>, vector<8x128xf32> -> vector<8x128xf32>
    %13 = arith.addf %11, %12 : vector<8x128xf32>
    %cst_6 = arith.constant dense<0.000000e+00> : vector<8x128xf32>
    %14 = tpu.matmul %10, %1, %cst_6 {dimension_numbers = #tpu.dot_dimension_numbers<[1], [0], [0], [1], [0, 0, 1, 1], [], []>} : vector<8x128xbf16>, vector<128x128xbf16>, vector<8x128xf32> -> vector<8x128xf32>
    %15 = arith.addf %13, %14 : vector<8x128xf32>
    %cst_7 = arith.constant 3.125000e-02 : f32
    %16 = vector.broadcast %cst_7 : f32 to vector<8x128xf32>
    %17 = arith.mulf %15, %16 : vector<8x128xf32>
    %18 = arith.subf %0, %17 : vector<8x128xf32>
    %19 = arith.mulf %18, %18 : vector<8x128xf32>
    %20 = arith.truncf %19 : vector<8x128xf32> to vector<8x128xbf16>
    %21 = arith.extf %20 : vector<8x128xbf16> to vector<8x128xf32>
    %22 = arith.subf %19, %21 : vector<8x128xf32>
    %23 = arith.truncf %22 : vector<8x128xf32> to vector<8x128xbf16>
    %24 = arith.extf %23 : vector<8x128xbf16> to vector<8x128xf32>
    %25 = arith.subf %22, %24 : vector<8x128xf32>
    %26 = arith.truncf %25 : vector<8x128xf32> to vector<8x128xbf16>
    %cst_8 = arith.constant dense<0.000000e+00> : vector<8x128xf32>
    %27 = tpu.matmul %20, %1, %cst_8 {dimension_numbers = #tpu.dot_dimension_numbers<[1], [0], [0], [1], [0, 0, 1, 1], [], []>} : vector<8x128xbf16>, vector<128x128xbf16>, vector<8x128xf32> -> vector<8x128xf32>
    %cst_9 = arith.constant dense<0.000000e+00> : vector<8x128xf32>
    %28 = tpu.matmul %23, %1, %cst_9 {dimension_numbers = #tpu.dot_dimension_numbers<[1], [0], [0], [1], [0, 0, 1, 1], [], []>} : vector<8x128xbf16>, vector<128x128xbf16>, vector<8x128xf32> -> vector<8x128xf32>
    %29 = arith.addf %27, %28 : vector<8x128xf32>
    %cst_10 = arith.constant dense<0.000000e+00> : vector<8x128xf32>
    %30 = tpu.matmul %26, %1, %cst_10 {dimension_numbers = #tpu.dot_dimension_numbers<[1], [0], [0], [1], [0, 0, 1, 1], [], []>} : vector<8x128xbf16>, vector<128x128xbf16>, vector<8x128xf32> -> vector<8x128xf32>
    %31 = arith.addf %29, %30 : vector<8x128xf32>
    %cst_11 = arith.constant 0.0322580636 : f32
    %32 = vector.broadcast %cst_11 : f32 to vector<8x128xf32>
    %33 = arith.mulf %31, %32 : vector<8x128xf32>
    %34 = math.sqrt %33 : vector<8x128xf32>
    %cst_12 = arith.constant 9.99999997E-7 : f32
    %35 = vector.broadcast %cst_12 : f32 to vector<8x128xf32>
    %36 = arith.addf %34, %35 : vector<8x128xf32>
    %37 = tpu.reciprocal %36 : vector<8x128xf32> -> vector<8x128xf32>
    %38 = vector.broadcast %2 : f32 to vector<8x128xf32>
    %39 = arith.mulf %38, %37 : vector<8x128xf32>
    %40 = arith.mulf %18, %39 : vector<8x128xf32>
    %41 = vector.broadcast %3 : f32 to vector<8x128xf32>
    %42 = arith.addf %40, %41 : vector<8x128xf32>
    %c0_13 = arith.constant 0 : index
    %c0_14 = arith.constant 0 : index
    %43 = vector.load %arg5[%c0_13, %c0_14] : memref<8x128xf32, #tpu.memory_space<vmem>>, vector<8x128xf32>
    tpu.vector_store %arg5[%c0_13, %c0_14], %42 {strides = array<i32>} : memref<8x128xf32, #tpu.memory_space<vmem>>, vector<8x128xf32>,
    return
  }
  func.func @transform_0(%arg0: i32) -> i32 {
    %c0_i32 = arith.constant 0 : i32
    %c0_i32_0 = arith.constant 0 : i32
    return %c0_i32 : i32
  }
  func.func @transform_1(%arg0: i32) -> i32 {
    %c0_i32 = arith.constant 0 : i32
    %c0_i32_0 = arith.constant 0 : i32
    return %c0_i32 : i32
  }
  func.func @transform_2(%arg0: i32) -> (i32, i32) {
    %c0_i32 = arith.constant 0 : i32
    %c0_i32_0 = arith.constant 0 : i32
    %c0_i32_1 = arith.constant 0 : i32
    return %c0_i32, %c0_i32_0 : i32, i32
  }
  func.func @transform_3(%arg0: i32) -> (i32, i32) {
    %c0_i32 = arith.constant 0 : i32
    %c0_i32_0 = arith.constant 0 : i32
    return %arg0, %c0_i32 : i32, i32
  }
  func.func @transform_4(%arg0: i32) -> (i32, i32) {
    %c0_i32 = arith.constant 0 : i32
    %c0_i32_0 = arith.constant 0 : i32
    return %arg0, %c0_i32 : i32, i32
  }
}

</mosaic_0001>

<llo_original>
// kernel: tpu_custom_call.1
$region0: #{tpu_custom_call.1}
  #allocation0 [shape = 'u32[]', space=smem, size = 0x4, offset = 0x4, fixed_abs, tag = 'smem constant byte address 0x4 - core index']
  #allocation1 [shape = 'u32[72,128]{1,0:T(1,128)}', space=vmem, size = 0x9000, scoped, tag = 'internal scratch']
  #allocation2 [shape = 'f32[1]{0:T(128)S(6)}', space=smem, size = 0x200, scoped, tag = 'scoped memory for tpu_custom_call.1']
  #allocation3 [shape = 'f32[1]{0:T(128)S(6)}', space=smem, size = 0x200, scoped, tag = 'scoped memory for tpu_custom_call.1']
  %s0 = inlined_call_operand.<no memory space> [shape: f32[1], index: 0, kind: input, shape index: {}]
  %s1 = inlined_call_operand.<no memory space> [shape: f32[1], index: 1, kind: input, shape index: {}]
  %s2 = inlined_call_operand.hbm [shape: bf16[128,128], index: 2, kind: input, shape index: {}]
  %s3 = inlined_call_operand.vmem [shape: f32[4,128], index: 3, kind: input, shape index: {}]
  %s4 = inlined_call_operand.hbm [shape: f32[4,128], index: 4, kind: output, shape index: {}]
  %s5 = sld [smem:[#allocation0]]
  $region30: #{tpu_custom_call.1} parent=0
    _
  %s7 = ssub.s32 1, %s5
  %s8 = scalar_select 0, %s7, %s5
  %9 = sst [smem:[#allocation2]] %s0
  %10 = sst [smem:[#allocation3]] %s1
  $region1: #{tpu_custom_call.1} parent=0
    #allocation4 [shape = 'u8[32768]{0}', space=vmem, size = 0x8000, scoped, tag = 'input window, operand 2, single buffered']
    #allocation5 [shape = 's32[1]{0}', space=sflag, size = 0x4, scoped, tag = 'scoped memory for tpu_custom_call.1']
    #allocation6 [shape = 's32[1]{0}', space=sflag, size = 0x4, scoped, tag = 'scoped memory for tpu_custom_call.1']
    #allocation7 [shape = 'u8[4096]{0}', space=vmem, size = 0x1000, scoped, tag = 'output window, operand 0, single buffered']
    %11 = vsyncpa [#allocation5], 0
    %12 = vsyncpa [#allocation6], 0
    // Predicated region
    $region2: #{tpu_custom_call.1} parent=1 // pred_check
      _
    $region3: #{tpu_custom_call.1} parent=1 // pred_check_branch
      %14 = sbr.rel (0) target = $region5
    $region4: #{tpu_custom_call.1} parent=1 // pred_region
      _
    $region5: #{tpu_custom_call.1} parent=1 // pred_fallthru
      _
    // Predicated region
    $region6: #{tpu_custom_call.1} parent=1 // pred_check
      _
    $region7: #{tpu_custom_call.1} parent=1 // pred_check_branch
      %16 = sbr.rel (0) target = $region9
    $region8: #{tpu_custom_call.1} parent=1 // pred_region
      _
    $region9: #{tpu_custom_call.1} parent=1 // pred_fallthru
      _
    // Predicated region
    $region10: #{tpu_custom_call.1} parent=1 // pred_check
      _
    $region11: #{tpu_custom_call.1} parent=1 // pred_check_branch
      %18 = sbr.rel (0) target = $region13
    $region12: #{tpu_custom_call.1} parent=1 // pred_region
      %20 = vsyncadd [#allocation5], 0
      %s21 = sshll.u32 %s2, 4
      %s22 = int_to_ptr.hbm [resolvable:$true] %s21
      %s23 = sshll.u32 [#allocation4], 4
      %s24 = int_to_ptr.vmem [resolvable:$true] %s23
      %29 = dma.hbm_to_vmem [thread:$0]  %s22, 1024, %s24, [#allocation5], 64, 64, 4
    $region13: #{tpu_custom_call.1} parent=1 // pred_fallthru
      _
    // Predicated region
    $region14: #{tpu_custom_call.1} parent=1 // pred_check
      _
    $region15: #{tpu_custom_call.1} parent=1 // pred_check_branch
      %31 = sbr.rel (0) target = $region17
    $region16: #{tpu_custom_call.1} parent=1 // pred_region
      _
    $region17: #{tpu_custom_call.1} parent=1 // pred_fallthru
      _
    // Predicated region
    $region18: #{tpu_custom_call.1} parent=1 // pred_check
      _
    $region19: #{tpu_custom_call.1} parent=1 // pred_check_branch
      %33 = sbr.rel (0) target = $region21
    $region20: #{tpu_custom_call.1} parent=1 // pred_region
      %35 = dma.done [#allocation5], 1024
    $region21: #{tpu_custom_call.1} parent=1 // pred_fallthru
      _
    %v36 = vld [vmem:[%s3] sm:$0xff]
    %v37 = vld [vmem:[#allocation4] sm:$0xf]
    %v38 = vld [vmem:[#allocation4 + $0x4] sm:$0xf]
    %v39 = vld [vmem:[#allocation4 + $0x8] sm:$0xf]
    %v40 = vld [vmem:[#allocation4 + $0xc] sm:$0xf]
    %v41 = vld [vmem:[#allocation4 + $0x10] sm:$0xf]
    %v42 = vld [vmem:[#allocation4 + $0x14] sm:$0xf]
    %v43 = vld [vmem:[#allocation4 + $0x18] sm:$0xf]
    %v44 = vld [vmem:[#allocation4 + $0x1c] sm:$0xf]
    %v45 = vld [vmem:[#allocation4 + $0x20] sm:$0xf]
    %v46 = vld [vmem:[#allocation4 + $0x24] sm:$0xf]
    %v47 = vld [vmem:[#allocation4 + $0x28] sm:$0xf]
    %v48 = vld [vmem:[#allocation4 + $0x2c] sm:$0xf]
    %v49 = vld [vmem:[#allocation4 + $0x30] sm:$0xf]
    %v50 = vld [vmem:[#allocation4 + $0x34] sm:$0xf]
    %v51 = vld [vmem:[#allocation4 + $0x38] sm:$0xf]
    %v52 = vld [vmem:[#allocation4 + $0x3c] sm:$0xf]
    %s53 = sld [smem:[#allocation2]]
    %s54 = sld [smem:[#allocation3]]
    %v55 = vpack.c.bf16 %v36, %v36
    %v56 = vunpack.c.l.bf16 %v55
    %v57 = vsub.f32 %v36, %v56
    %v58 = vpack.c.bf16 %v57, %v57
    %v59 = vunpack.c.l.bf16 %v58
    %v60 = vsub.f32 %v57, %v59
    %v61 = vpack.c.bf16 %v60, %v60
    %v78 = vunpack.c.l.b16 %v37
    %v79 = vunpack.c.l.b16 %v38
    %v80 = vunpack.c.l.b16 %v39
    %v81 = vunpack.c.l.b16 %v40
    %v82 = vunpack.c.l.b16 %v41
    %v83 = vunpack.c.l.b16 %v42
    %v84 = vunpack.c.l.b16 %v43
    %v85 = vunpack.c.l.b16 %v44
    %v86 = vunpack.c.l.b16 %v45
    %v87 = vunpack.c.l.b16 %v46
    %v88 = vunpack.c.l.b16 %v47
    %v89 = vunpack.c.l.b16 %v48
    %v90 = vunpack.c.l.b16 %v49
    %v91 = vunpack.c.l.b16 %v50
    %v92 = vunpack.c.l.b16 %v51
    %v93 = vunpack.c.l.b16 %v52
    %v94 = vpack.c.b16 %v79, %v78
    %v95 = vpack.c.b16 %v81, %v80
    %v96 = vpack.c.b16 %v83, %v82
    %v97 = vpack.c.b16 %v85, %v84
    %v98 = vpack.c.b16 %v87, %v86
    %v99 = vpack.c.b16 %v89, %v88
    %v100 = vpack.c.b16 %v91, %v90
    %v101 = vpack.c.b16 %v93, %v92
    %110 = vmatpush.bf16.msra.mxu0 %v101
    %111 = vmatpush.bf16.msra.mxu0 %v100
    %112 = vmatpush.bf16.msra.mxu0 %v99
    %113 = vmatpush.bf16.msra.mxu0 %v98
    %114 = vmatpush.bf16.msra.mxu0 %v97
    %115 = vmatpush.bf16.msra.mxu0 %v96
    %116 = vmatpush.bf16.msra.mxu0 %v95
    %117 = vmatpush.bf16.msra.mxu0 %v94
    %118 = vmatmul.bf16.gmra.mxu0 %v58
    %v119 = vpop.f32.mrf.mxu0
    %v120 = vadd.f32 0.0, %v119
    %v121 = vpop.f32.mrf.mxu0
    %122 = vdwg.mxu0
    %123 = vmatpush.bf16.msra.mxu0 %v101
    %124 = vmatpush.bf16.msra.mxu0 %v100
    %125 = vmatpush.bf16.msra.mxu0 %v99
    %126 = vmatpush.bf16.msra.mxu0 %v98
    %127 = vmatpush.bf16.msra.mxu0 %v97
    %128 = vmatpush.bf16.msra.mxu0 %v96
    %129 = vmatpush.bf16.msra.mxu0 %v95
    %130 = vmatpush.bf16.msra.mxu0 %v94
    %131 = vmatmul.bf16.gmra.mxu0 %v55
    %v132 = vpop.f32.mrf.mxu0
    %v133 = vadd.f32 %v120, %v132
    %v134 = vpop.f32.mrf.mxu0
    %135 = vdwg.mxu0
    %136 = vmatpush.bf16.msra.mxu0 %v101
    %137 = vmatpush.bf16.msra.mxu0 %v100
    %138 = vmatpush.bf16.msra.mxu0 %v99
    %139 = vmatpush.bf16.msra.mxu0 %v98
    %140 = vmatpush.bf16.msra.mxu0 %v97
    %141 = vmatpush.bf16.msra.mxu0 %v96
    %142 = vmatpush.bf16.msra.mxu0 %v95
    %143 = vmatpush.bf16.msra.mxu0 %v94
    %144 = vmatmul.bf16.gmra.mxu0 %v61
    %v145 = vpop.f32.mrf.mxu0
    %v146 = vadd.f32 0.0, %v145
    %v147 = vpop.f32.mrf.mxu0
    %148 = vdwg.mxu0
    %v149 = vadd.f32 %v133, %v146
    %v150 = vmul.f32 %v149, 0.03125
    %v151 = vsub.f32 %v36, %v150
    %v152 = vmul.f32 %v151, %v151
    %v153 = vpack.c.bf16 %v152, %v152
    %v154 = vunpack.c.l.bf16 %v153
    %v155 = vsub.f32 %v152, %v154
    %v156 = vpack.c.bf16 %v155, %v155
    %v157 = vunpack.c.l.bf16 %v156
    %v158 = vsub.f32 %v155, %v157
    %v159 = vpack.c.bf16 %v158, %v158
    %160 = vmatpush.bf16.msra.mxu0 %v101
    %161 = vmatpush.bf16.msra.mxu0 %v100
    %162 = vmatpush.bf16.msra.mxu0 %v99
    %163 = vmatpush.bf16.msra.mxu0 %v98
    %164 = vmatpush.bf16.msra.mxu0 %v97
    %165 = vmatpush.bf16.msra.mxu0 %v96
    %166 = vmatpush.bf16.msra.mxu0 %v95
    %167 = vmatpush.bf16.msra.mxu0 %v94
    %168 = vmatmul.bf16.gmra.mxu0 %v156
    %v169 = vpop.f32.mrf.mxu0
    %v170 = vadd.f32 0.0, %v169
    %v171 = vpop.f32.mrf.mxu0
    %172 = vdwg.mxu0
    %173 = vmatpush.bf16.msra.mxu0 %v101
    %174 = vmatpush.bf16.msra.mxu0 %v100
    %175 = vmatpush.bf16.msra.mxu0 %v99
    %176 = vmatpush.bf16.msra.mxu0 %v98
    %177 = vmatpush.bf16.msra.mxu0 %v97
    %178 = vmatpush.bf16.msra.mxu0 %v96
    %179 = vmatpush.bf16.msra.mxu0 %v95
    %180 = vmatpush.bf16.msra.mxu0 %v94
    %181 = vmatmul.bf16.gmra.mxu0 %v153
    %v182 = vpop.f32.mrf.mxu0
    %v183 = vadd.f32 %v170, %v182
    %v184 = vpop.f32.mrf.mxu0
    %185 = vdwg.mxu0
    %186 = vmatpush.bf16.msra.mxu0 %v101
    %187 = vmatpush.bf16.msra.mxu0 %v100
    %188 = vmatpush.bf16.msra.mxu0 %v99
    %189 = vmatpush.bf16.msra.mxu0 %v98
    %190 = vmatpush.bf16.msra.mxu0 %v97
    %191 = vmatpush.bf16.msra.mxu0 %v96
    %192 = vmatpush.bf16.msra.mxu0 %v95
    %193 = vmatpush.bf16.msra.mxu0 %v94
    %194 = vmatmul.bf16.gmra.mxu0 %v159
    %v195 = vpop.f32.mrf.mxu0
    %v196 = vadd.f32 0.0, %v195
    %v197 = vpop.f32.mrf.mxu0
    %198 = vdwg.mxu0
    %v199 = vadd.f32 %v183, %v196
    %v200 = vmul.f32 %v199, 0.032258064
    %v201 = vrsqrt.pop %v200
    %v202 = vmul.f32 %v201, %v200
    %v203 = vmul.f32 %v202, %v201
    %v204 = vmul.f32 0.5, %v203
    %v205 = vsub.f32 1.5, %v204
    %v206 = vmul.f32 %v201, %v205
    %v207 = vmul.f32 %v200, %v206
    %vm208 = vcmp.eq.f32.partialorder %v200, inf
    %v209 = vsel %vm208, %v200, %v207
    %vm210 = vcmp.eq.f32.partialorder %v200, 0.0
    %v211 = vand.u32 %v200, 2147483648
    %v212 = vsel %vm210, %v211, %v209
    %v213 = vadd.f32 %v212, 1e-06
    %v214 = vrcp.pop %v213
    %v215 = vmul.f32 %v213, %v214
    %v216 = vsub.f32 1.0, %v215
    %v217 = vmul.f32 %v214, %v216
    %v218 = vadd.f32 %v214, %v217
    %vm219 = vweird.f32 %v213
    %vm220 = vweird.f32 %v214
    %vm221 = vmor %vm219, %vm220
    %v222 = vsel %vm221, %v214, %v218
    %v223 = vand.u32 2147483647, %v213
    %vm224 = vcmp.eq.f32.partialorder %v223, 8.507059e+37
    %v225 = vand.u32 %v213, 2147483648
    %v226 = vor.u32 1.1754944e-38, %v225
    %v227 = vsel %vm224, %v226, %v222
    %v228 = vstv %s53
    %v229 = vmul.f32 %v228, %v227
    %v230 = vmul.f32 %v151, %v229
    %v231 = vstv %s54
    %v232 = vadd.f32 %v230, %v231
    %233 = vst [vmem:[#allocation7] sm:$0xff] %v232
    // Predicated region
    $region22: #{tpu_custom_call.1} parent=1 // pred_check
      _
    $region23: #{tpu_custom_call.1} parent=1 // pred_check_branch
      %235 = sbr.rel (0) target = $region25
    $region24: #{tpu_custom_call.1} parent=1 // pred_region
      %237 = vsyncadd [#allocation6], 64
      %s238 = sshll.u32 [#allocation7], 4
      %s239 = int_to_ptr.vmem [resolvable:$true] %s238
      %s240 = sshll.u32 %s4, 4
      %s241 = int_to_ptr.hbm [resolvable:$true] %s240
      %246 = dma.vmem_to_hbm [thread:$0]  %s239, 64, %s241, [#allocation6], 64, 64, 4
    $region25: #{tpu_custom_call.1} parent=1 // pred_fallthru
      _
    // Predicated region
    $region26: #{tpu_custom_call.1} parent=1 // pred_check
      _
    $region27: #{tpu_custom_call.1} parent=1 // pred_check_branch
      %248 = sbr.rel (0) target = $region29
    $region28: #{tpu_custom_call.1} parent=1 // pred_region
      %250 = dma.done [#allocation6], 128
    $region29: #{tpu_custom_call.1} parent=1 // pred_fallthru
      _
    %251 = vsyncpa [#allocation5], 1
    %252 = vsyncpa [#allocation6], 1

</llo_original>
